<compile_context>
chip_gen: v7x
topology: tpu7x:2x2x1
jax: 0.10.0
libtpu: 0.0.40
codegen_flags: <defaults>
</compile_context>

<pallas_src>
import math

import jax
import jax.numpy as jnp
import numpy as np
from jax.experimental import pallas as pl
from jax.experimental.pallas import tpu as pltpu

_LOG_2PI = math.log(2.0 * math.pi)
DEFAULT_BLOCK_ROWS = 512     # batch rows per grid step (multiple of 8)


def _log_vmf_norm_const(kappa, p):
    """log C_p(kappa) of a vMF distribution on S^{p-1} (p > 2).

    Uses the standard uniform asymptotic expansion of log I_nu, algebraically
    simplified so each call costs 1 sqrt + 2 logs and has no log(kappa)
    singularity:
        log C_p(k) = c0 + nu*(log(1+sq) - sq) + 0.5*log(sq),
        sq = sqrt(1 + (k/nu)^2),
        c0 = nu*log(nu) - (p/2)*log(2pi) + 0.5*log(2pi*nu)   (compile-time).
    Pure elementwise jnp math -> usable both on host and inside the kernel.
    """
    nu = p / 2.0 - 1.0
    c0 = (nu * math.log(nu) - (p / 2.0) * _LOG_2PI
          + 0.5 * math.log(2.0 * math.pi * nu))
    z = kappa / nu
    sq = jnp.sqrt(1.0 + z * z)
    return c0 + nu * (jnp.log(1.0 + sq) - sq) + 0.5 * jnp.log(sq)


# ----------------------------------------------------------------------------
# Pallas kernel: per-sample ELK loss term for one batch-row tile.
# ----------------------------------------------------------------------------
def _elk_kernel(kappa_sref, mur_ref, kr_ref, mup_ref, kp_ref, mun_ref, kn_ref,
                out_ref):
    # kappa_sref : SMEM (1,) f32        learned global scale (self.kappa)
    # mur_ref    : VMEM [TB, D]         reference means   (native layout)
    # kr_ref     : VMEM [TB, 1]         reference concentrations
    # mup_ref    : VMEM [TB, D]         positive means
    # kp_ref     : VMEM [TB, 1]         positive concentrations
    # mun_ref    : VMEM [TB, K, D]      negative means
    # kn_ref     : VMEM [TB, K]         negative concentrations
    # out_ref    : VMEM [TB, 1] f32     per-sample loss term (before -mean)
    scale = kappa_sref[0]
    D = mur_ref.shape[-1]
    p = float(D)
    f32 = jnp.float32

    mur = mur_ref[...].astype(f32)                     # [TB, D]
    mup = mup_ref[...].astype(f32)                     # [TB, D]
    mun = mun_ref[...].astype(f32)                     # [TB, K, D]
    kr = kr_ref[...].astype(f32)                       # [TB, 1]
    kp = kp_ref[...].astype(f32)                       # [TB, 1]
    kn = kn_ref[...].astype(f32)                       # [TB, K]

    # --- D-contraction: fully vectorized elementwise products reduced over
    # the lane (D) axis.  No per-row slicing, no wrapper-side transposes.
    dot_p = jnp.sum(mur * mup, axis=-1, keepdims=True)            # [TB, 1]
    n_r = jnp.sum(mur * mur, axis=-1, keepdims=True)              # [TB, 1]
    n_p = jnp.sum(mup * mup, axis=-1, keepdims=True)              # [TB, 1]
    dot_n = jnp.sum(mur[:, None, :] * mun, axis=-1)               # [TB, K]
    n_n = jnp.sum(mun * mun, axis=-1)                             # [TB, K]

    # kappa3 = || k1*mu1 + k2*mu2 ||  via the exact quadratic expansion.
    k3_pos = jnp.sqrt(kr * kr * n_r + kp * kp * n_p + 2.0 * (kr * kp) * dot_p)
    k3_neg = jnp.sqrt(kr * kr * n_r + kn * kn * n_n + 2.0 * (kr * kn) * dot_n)

    lc_r = _log_vmf_norm_const(kr, p)                  # shared by pos & neg
    sim_pos = (lc_r + _log_vmf_norm_const(kp, p)
               - _log_vmf_norm_const(k3_pos, p)) * scale           # [TB, 1]
    sim_neg = (lc_r + _log_vmf_norm_const(kn, p)
               - _log_vmf_norm_const(k3_neg, p)) * scale           # [TB, K]

    # Fused logsumexp over {pos, neg_1..K}: single max / exp / log pass.
    m = jnp.maximum(sim_pos, jnp.max(sim_neg, axis=-1, keepdims=True))
    s = (jnp.exp(sim_pos - m)
         + jnp.sum(jnp.exp(sim_neg - m), axis=-1, keepdims=True))
    lse = m + jnp.log(s)

    # torch: mean(sim_pos, dim=1) - logsumexp(cat(pos, neg), dim=1);
    # sim_pos has a single column so the mean is the identity.
    out_ref[...] = sim_pos - lse


# ----------------------------------------------------------------------------
# ELK.forward equivalent
# ----------------------------------------------------------------------------
def _round_up(x, m):
    return ((x + m - 1) // m) * m


def elk_forward(kappa_param, mu_ref, kappa_ref, mu_pos, kappa_pos,
                mu_neg, kappa_neg, *, block_rows=DEFAULT_BLOCK_ROWS):
    """Forward pass of the ELK module; returns the scalar loss."""
    B, D = mu_ref.shape
    f32 = jnp.float32

    if mu_neg is None:
        # TODO(synk): mu_neg=None branch (sim_neg = torch.roll(sim_pos, 1, 0))
        # is a trivial [B,1] rearrangement; kept in plain JAX.
        p = float(D)
        mu_r = mu_ref[:, None, :].astype(f32)
        k_r = kappa_ref[:, None, :].astype(f32)
        k3 = jnp.linalg.norm(k_r * mu_r + kappa_pos.astype(f32) * mu_pos.astype(f32),
                             axis=-1, keepdims=True)
        sim_pos = ((_log_vmf_norm_const(k_r, p)
                    + _log_vmf_norm_const(kappa_pos.astype(f32), p)
                    - _log_vmf_norm_const(k3, p)) * kappa_param[0])[..., 0]
        sim_neg = jnp.roll(sim_pos, 1, axis=0)
        lse = jax.scipy.special.logsumexp(
            jnp.concatenate([sim_pos, sim_neg], axis=1), axis=1)
        return -jnp.mean(sim_pos[:, 0] - lse)

    K = mu_neg.shape[1]

    # ---- tile-size selection (rows of the batch, multiple of 8) ----
    B8 = _round_up(B, 8)
    TB = min(block_rows, B8)
    # v7x has 2 TensorCores sharing VMEM: prefer >= 2 grid steps when the
    # batch allows it so dimension_semantics=("parallel",) shards real work.
    if B8 // TB < 2 and B8 >= 16:
        TB = _round_up((B8 + 1) // 2, 8)
    n_blocks = (B8 + TB - 1) // TB
    B_pad = n_blocks * TB
    pad = B_pad - B

    def pad_mu(x):      # pad with unit e1 vectors so padded rows stay finite
        if pad == 0:
            return x
        filler = jnp.zeros((pad,) + x.shape[1:], x.dtype).at[..., 0].set(1.0)
        return jnp.concatenate([x, filler], axis=0)

    def pad_kappa(x):   # pad with kappa = 1
        if pad == 0:
            return x
        return jnp.concatenate(
            [x, jnp.ones((pad,) + x.shape[1:], x.dtype)], axis=0)

    # Native layouts, no transposes, no f32 up-cast in HBM (dtype pass-through;
    # the kernel upcasts to f32 after the DMA).  Reshapes only drop size-1 dims.
    mur = pad_mu(mu_ref)                                  # [B_pad, D]
    mup = pad_mu(mu_pos.reshape(B, D))                    # [B_pad, D]
    mun = pad_mu(mu_neg)                                  # [B_pad, K, D]
    kr = pad_kappa(kappa_ref.reshape(B, 1))               # [B_pad, 1]
    kp = pad_kappa(kappa_pos.reshape(B, 1))               # [B_pad, 1]
    kn = pad_kappa(kappa_neg.reshape(B, K))               # [B_pad, K]

    # VMEM budget: double-buffered blocks; 32 MiB is safe on every generation
    # (v5e scoped default is only 16 MiB), grown if a huge tile needs it.
    blk_bytes = TB * (2 * D + K * D + K + 3) * 4
    vmem_limit = int(min(64 * 1024 * 1024, max(32 * 1024 * 1024, 3 * blk_bytes)))

    per_sample = pl.pallas_call(
        _elk_kernel,
        out_shape=jax.ShapeDtypeStruct((B_pad, 1), jnp.float32),
        grid=(n_blocks,),
        in_specs=[
            pl.BlockSpec(memory_space=pltpu.MemorySpace.SMEM),   # kappa scalar
            pl.BlockSpec((TB, D), lambda i: (i, 0)),             # mu_ref
            pl.BlockSpec((TB, 1), lambda i: (i, 0)),             # kappa_ref
            pl.BlockSpec((TB, D), lambda i: (i, 0)),             # mu_pos
            pl.BlockSpec((TB, 1), lambda i: (i, 0)),             # kappa_pos
            pl.BlockSpec((TB, K, D), lambda i: (i, 0, 0)),       # mu_neg
            pl.BlockSpec((TB, K), lambda i: (i, 0)),             # kappa_neg
        ],
        out_specs=pl.BlockSpec((TB, 1), lambda i: (i, 0)),
        compiler_params=pltpu.CompilerParams(
            dimension_semantics=("parallel",),   # shard rows across v7x's 2 TCs
            vmem_limit_bytes=vmem_limit,
        ),
    )(kappa_param.astype(f32), mur, kr, mup, kp, mun, kn)

    # Final mean over the valid rows (padded rows are dropped).
    return -jnp.mean(per_sample[:B, 0])


# ----------------------------------------------------------------------------
# Pure-JAX reference (mirrors the torch ELK.forward) for validation.
# NOTE: uses the same asymptotic log-Bessel expansion as the kernel (exact
# Bessel I_nu has no general JAX primitive), valid for p > 2.
# ----------------------------------------------------------------------------
def elk_reference(kappa_param, mu_ref, kappa_ref, mu_pos, kappa_pos,
                  mu_neg, kappa_neg):
    p = float(mu_ref.shape[-1])
    mu_r = mu_ref[:, None, :]
    k_r = kappa_ref[:, None, :]

    def log_ppk(mu1, k1, mu2, k2):
        k3 = jnp.linalg.norm(k1 * mu1 + k2 * mu2, axis=-1)[..., None]
        ppk = (_log_vmf_norm_const(k1, p) + _log_vmf_norm_const(k2, p)
               - _log_vmf_norm_const(k3, p)) * kappa_param[0]
        return ppk[..., 0]

    sim_pos = log_ppk(mu_r, k_r, mu_pos, kappa_pos)              # [B, 1]
    if mu_neg is not None:
        sim_neg = log_ppk(mu_r, k_r, mu_neg, kappa_neg)          # [B, K]
    else:
        sim_neg = jnp.roll(sim_pos, 1, axis=0)
    lse = jax.scipy.special.logsumexp(
        jnp.concatenate([sim_pos, sim_neg], axis=1), axis=1)
    return -jnp.mean(jnp.mean(sim_pos, axis=1) - lse)


def _normalize(x):
    return x / jnp.linalg.norm(x, axis=-1, keepdims=True)


if __name__ == "__main__":
    B, K, D = 8, 8, 32

    key = jax.random.PRNGKey(0)
    ks = jax.random.split(key, 6)

    # module parameter: kappa = ones(1) * kappa_init (kappa_init = 20)
    kappa_param = jnp.ones((1,), jnp.float32) * 20.0

    mu_ref = _normalize(jax.random.normal(ks[0], (B, D), jnp.float32))
    kappa_ref = jax.random.uniform(ks[1], (B, 1), jnp.float32, 10.0, 30.0)
    mu_pos = _normalize(jax.random.normal(ks[2], (B, 1, D), jnp.float32))
    kappa_pos = jax.random.uniform(ks[3], (B, 1, 1), jnp.float32, 10.0, 30.0)
    mu_neg = _normalize(jax.random.normal(ks[4], (B, K, D), jnp.float32))
    kappa_neg = jax.random.uniform(ks[5], (B, K, 1), jnp.float32, 10.0, 30.0)

    loss = jax.block_until_ready(
        jax.jit(elk_forward)(kappa_param, mu_ref, kappa_ref, mu_pos, kappa_pos,
                             mu_neg, kappa_neg))
    ref = jax.block_until_ready(
        elk_reference(kappa_param, mu_ref, kappa_ref, mu_pos, kappa_pos,
                      mu_neg, kappa_neg))

    if not np.allclose(np.asarray(loss), np.asarray(ref), rtol=1e-3, atol=1e-3):
        raise AssertionError(f"pallas loss {loss} != reference {ref}")
    print("KERNEL_OK")
</pallas_src>

<mosaic_0001>
module attributes {stable_mosaic.version = 11 : i64} {
  func.func @_elk_kernel(%arg0: i32, %arg1: memref<1xf32, #tpu.memory_space<smem>>, %arg2: memref<8x32xf32, #tpu.memory_space<vmem>>, %arg3: memref<8x1xf32, #tpu.memory_space<vmem>>, %arg4: memref<8x32xf32, #tpu.memory_space<vmem>>, %arg5: memref<8x1xf32, #tpu.memory_space<vmem>>, %arg6: memref<8x8x32xf32, #tpu.memory_space<vmem>>, %arg7: memref<8x8xf32, #tpu.memory_space<vmem>>, %arg8: memref<8x1xf32, #tpu.memory_space<vmem>>) attributes {dimension_semantics = [#tpu.dimension_semantics<parallel>], iteration_bounds = array<i64: 1>, scalar_prefetch = 0 : i64, scratch_operands = 0 : i64, tpu.core_type = #tpu.core_type<tc>, window_params = [{transform_indices = @transform_0, window_bounds = array<i64: 1>}, {transform_indices = @transform_1, window_bounds = array<i64: 8, 32>}, {transform_indices = @transform_2, window_bounds = array<i64: 8, 1>}, {transform_indices = @transform_3, window_bounds = array<i64: 8, 32>}, {transform_indices = @transform_4, window_bounds = array<i64: 8, 1>}, {transform_indices = @transform_5, window_bounds = array<i64: 8, 8, 32>}, {transform_indices = @transform_6, window_bounds = array<i64: 8, 8>}, {transform_indices = @transform_7, window_bounds = array<i64: 8, 1>}]} {
    %c0 = arith.constant 0 : index
    %0 = memref.load %arg1[%c0] : memref<1xf32, #tpu.memory_space<smem>>
    %c0_0 = arith.constant 0 : index
    %c0_1 = arith.constant 0 : index
    %1 = vector.load %arg2[%c0_0, %c0_1] : memref<8x32xf32, #tpu.memory_space<vmem>>, vector<8x32xf32>
    %c0_2 = arith.constant 0 : index
    %c0_3 = arith.constant 0 : index
    %2 = vector.load %arg4[%c0_2, %c0_3] : memref<8x32xf32, #tpu.memory_space<vmem>>, vector<8x32xf32>
    %c0_4 = arith.constant 0 : index
    %c0_5 = arith.constant 0 : index
    %c0_6 = arith.constant 0 : index
    %3 = vector.load %arg6[%c0_4, %c0_5, %c0_6] : memref<8x8x32xf32, #tpu.memory_space<vmem>>, vector<8x8x32xf32>
    %c0_7 = arith.constant 0 : index
    %c0_8 = arith.constant 0 : index
    %4 = vector.load %arg3[%c0_7, %c0_8] : memref<8x1xf32, #tpu.memory_space<vmem>>, vector<8x1xf32>
    %c0_9 = arith.constant 0 : index
    %c0_10 = arith.constant 0 : index
    %5 = vector.load %arg5[%c0_9, %c0_10] : memref<8x1xf32, #tpu.memory_space<vmem>>, vector<8x1xf32>
    %c0_11 = arith.constant 0 : index
    %c0_12 = arith.constant 0 : index
    %6 = vector.load %arg7[%c0_11, %c0_12] : memref<8x8xf32, #tpu.memory_space<vmem>>, vector<8x8xf32>
    %7 = arith.mulf %1, %2 : vector<8x32xf32>
    %cst = arith.constant dense<0.000000e+00> : vector<8xf32>
    %8 = vector.multi_reduction <add>, %7, %cst [1] : vector<8x32xf32> to vector<8xf32>
    %9 = vector.shape_cast %8 : vector<8xf32> to vector<8x1xf32>
    %10 = arith.mulf %1, %1 : vector<8x32xf32>
    %cst_13 = arith.constant dense<0.000000e+00> : vector<8xf32>
    %11 = vector.multi_reduction <add>, %10, %cst_13 [1] : vector<8x32xf32> to vector<8xf32>
    %12 = vector.shape_cast %11 : vector<8xf32> to vector<8x1xf32>
    %13 = arith.mulf %2, %2 : vector<8x32xf32>
    %cst_14 = arith.constant dense<0.000000e+00> : vector<8xf32>
    %14 = vector.multi_reduction <add>, %13, %cst_14 [1] : vector<8x32xf32> to vector<8xf32>
    %15 = vector.shape_cast %14 : vector<8xf32> to vector<8x1xf32>
    %16 = vector.shape_cast %1 : vector<8x32xf32> to vector<8x1x32xf32>
    %17 = vector.broadcast %16 : vector<8x1x32xf32> to vector<8x8x32xf32>
    %18 = arith.mulf %17, %3 : vector<8x8x32xf32>
    %cst_15 = arith.constant dense<0.000000e+00> : vector<8x8xf32>
    %19 = vector.multi_reduction <add>, %18, %cst_15 [2] : vector<8x8x32xf32> to vector<8x8xf32>
    %20 = arith.mulf %3, %3 : vector<8x8x32xf32>
    %cst_16 = arith.constant dense<0.000000e+00> : vector<8x8xf32>
    %21 = vector.multi_reduction <add>, %20, %cst_16 [2] : vector<8x8x32xf32> to vector<8x8xf32>
    %22 = arith.mulf %4, %4 : vector<8x1xf32>
    %23 = arith.mulf %22, %12 : vector<8x1xf32>
    %24 = arith.mulf %5, %5 : vector<8x1xf32>
    %25 = arith.mulf %24, %15 : vector<8x1xf32>
    %26 = arith.addf %23, %25 : vector<8x1xf32>
    %27 = arith.mulf %4, %5 : vector<8x1xf32>
    %cst_17 = arith.constant 2.000000e+00 : f32
    %28 = vector.broadcast %cst_17 : f32 to vector<8x1xf32>
    %29 = arith.mulf %28, %27 : vector<8x1xf32>
    %30 = arith.mulf %29, %9 : vector<8x1xf32>
    %31 = arith.addf %26, %30 : vector<8x1xf32>
    %32 = math.sqrt %31 : vector<8x1xf32>
    %33 = arith.mulf %4, %4 : vector<8x1xf32>
    %34 = arith.mulf %33, %12 : vector<8x1xf32>
    %35 = arith.mulf %6, %6 : vector<8x8xf32>
    %36 = arith.mulf %35, %21 : vector<8x8xf32>
    %37 = vector.broadcast %34 : vector<8x1xf32> to vector<8x8xf32>
    %38 = arith.addf %37, %36 : vector<8x8xf32>
    %39 = vector.broadcast %4 : vector<8x1xf32> to vector<8x8xf32>
    %40 = arith.mulf %39, %6 : vector<8x8xf32>
    %cst_18 = arith.constant 2.000000e+00 : f32
    %41 = vector.broadcast %cst_18 : f32 to vector<8x8xf32>
    %42 = arith.mulf %41, %40 : vector<8x8xf32>
    %43 = arith.mulf %42, %19 : vector<8x8xf32>
    %44 = arith.addf %38, %43 : vector<8x8xf32>
    %45 = math.sqrt %44 : vector<8x8xf32>
    %cst_19 = arith.constant 1.500000e+01 : f32
    %46 = vector.broadcast %cst_19 : f32 to vector<8x1xf32>
    %47 = arith.divf %4, %46 : vector<8x1xf32>
    %48 = arith.mulf %47, %47 : vector<8x1xf32>
    %cst_20 = arith.constant 1.000000e+00 : f32
    %49 = vector.broadcast %cst_20 : f32 to vector<8x1xf32>
    %50 = arith.addf %49, %48 : vector<8x1xf32>
    %51 = math.sqrt %50 : vector<8x1xf32>
    %cst_21 = arith.constant 1.000000e+00 : f32
    %52 = vector.broadcast %cst_21 : f32 to vector<8x1xf32>
    %53 = arith.addf %52, %51 : vector<8x1xf32>
    %54 = math.log %53 : vector<8x1xf32>
    %55 = arith.subf %54, %51 : vector<8x1xf32>
    %cst_22 = arith.constant 1.500000e+01 : f32
    %56 = vector.broadcast %cst_22 : f32 to vector<8x1xf32>
    %57 = arith.mulf %56, %55 : vector<8x1xf32>
    %cst_23 = arith.constant 13.4876833 : f32
    %58 = vector.broadcast %cst_23 : f32 to vector<8x1xf32>
    %59 = arith.addf %58, %57 : vector<8x1xf32>
    %60 = math.log %51 : vector<8x1xf32>
    %cst_24 = arith.constant 5.000000e-01 : f32
    %61 = vector.broadcast %cst_24 : f32 to vector<8x1xf32>
    %62 = arith.mulf %61, %60 : vector<8x1xf32>
    %63 = arith.addf %59, %62 : vector<8x1xf32>
    %cst_25 = arith.constant 1.500000e+01 : f32
    %64 = vector.broadcast %cst_25 : f32 to vector<8x1xf32>
    %65 = arith.divf %5, %64 : vector<8x1xf32>
    %66 = arith.mulf %65, %65 : vector<8x1xf32>
    %cst_26 = arith.constant 1.000000e+00 : f32
    %67 = vector.broadcast %cst_26 : f32 to vector<8x1xf32>
    %68 = arith.addf %67, %66 : vector<8x1xf32>
    %69 = math.sqrt %68 : vector<8x1xf32>
    %cst_27 = arith.constant 1.000000e+00 : f32
    %70 = vector.broadcast %cst_27 : f32 to vector<8x1xf32>
    %71 = arith.addf %70, %69 : vector<8x1xf32>
    %72 = math.log %71 : vector<8x1xf32>
    %73 = arith.subf %72, %69 : vector<8x1xf32>
    %cst_28 = arith.constant 1.500000e+01 : f32
    %74 = vector.broadcast %cst_28 : f32 to vector<8x1xf32>
    %75 = arith.mulf %74, %73 : vector<8x1xf32>
    %cst_29 = arith.constant 13.4876833 : f32
    %76 = vector.broadcast %cst_29 : f32 to vector<8x1xf32>
    %77 = arith.addf %76, %75 : vector<8x1xf32>
    %78 = math.log %69 : vector<8x1xf32>
    %cst_30 = arith.constant 5.000000e-01 : f32
    %79 = vector.broadcast %cst_30 : f32 to vector<8x1xf32>
    %80 = arith.mulf %79, %78 : vector<8x1xf32>
    %81 = arith.addf %77, %80 : vector<8x1xf32>
    %82 = arith.addf %63, %81 : vector<8x1xf32>
    %cst_31 = arith.constant 1.500000e+01 : f32
    %83 = vector.broadcast %cst_31 : f32 to vector<8x1xf32>
    %84 = arith.divf %32, %83 : vector<8x1xf32>
    %85 = arith.mulf %84, %84 : vector<8x1xf32>
    %cst_32 = arith.constant 1.000000e+00 : f32
    %86 = vector.broadcast %cst_32 : f32 to vector<8x1xf32>
    %87 = arith.addf %86, %85 : vector<8x1xf32>
    %88 = math.sqrt %87 : vector<8x1xf32>
    %cst_33 = arith.constant 1.000000e+00 : f32
    %89 = vector.broadcast %cst_33 : f32 to vector<8x1xf32>
    %90 = arith.addf %89, %88 : vector<8x1xf32>
    %91 = math.log %90 : vector<8x1xf32>
    %92 = arith.subf %91, %88 : vector<8x1xf32>
    %cst_34 = arith.constant 1.500000e+01 : f32
    %93 = vector.broadcast %cst_34 : f32 to vector<8x1xf32>
    %94 = arith.mulf %93, %92 : vector<8x1xf32>
    %cst_35 = arith.constant 13.4876833 : f32
    %95 = vector.broadcast %cst_35 : f32 to vector<8x1xf32>
    %96 = arith.addf %95, %94 : vector<8x1xf32>
    %97 = math.log %88 : vector<8x1xf32>
    %cst_36 = arith.constant 5.000000e-01 : f32
    %98 = vector.broadcast %cst_36 : f32 to vector<8x1xf32>
    %99 = arith.mulf %98, %97 : vector<8x1xf32>
    %100 = arith.addf %96, %99 : vector<8x1xf32>
    %101 = arith.subf %82, %100 : vector<8x1xf32>
    %102 = vector.broadcast %0 : f32 to vector<8x1xf32>
    %103 = arith.mulf %101, %102 : vector<8x1xf32>
    %cst_37 = arith.constant 1.500000e+01 : f32
    %104 = vector.broadcast %cst_37 : f32 to vector<8x8xf32>
    %105 = arith.divf %6, %104 : vector<8x8xf32>
    %106 = arith.mulf %105, %105 : vector<8x8xf32>
    %cst_38 = arith.constant 1.000000e+00 : f32
    %107 = vector.broadcast %cst_38 : f32 to vector<8x8xf32>
    %108 = arith.addf %107, %106 : vector<8x8xf32>
    %109 = math.sqrt %108 : vector<8x8xf32>
    %cst_39 = arith.constant 1.000000e+00 : f32
    %110 = vector.broadcast %cst_39 : f32 to vector<8x8xf32>
    %111 = arith.addf %110, %109 : vector<8x8xf32>
    %112 = math.log %111 : vector<8x8xf32>
    %113 = arith.subf %112, %109 : vector<8x8xf32>
    %cst_40 = arith.constant 1.500000e+01 : f32
    %114 = vector.broadcast %cst_40 : f32 to vector<8x8xf32>
    %115 = arith.mulf %114, %113 : vector<8x8xf32>
    %cst_41 = arith.constant 13.4876833 : f32
    %116 = vector.broadcast %cst_41 : f32 to vector<8x8xf32>
    %117 = arith.addf %116, %115 : vector<8x8xf32>
    %118 = math.log %109 : vector<8x8xf32>
    %cst_42 = arith.constant 5.000000e-01 : f32
    %119 = vector.broadcast %cst_42 : f32 to vector<8x8xf32>
    %120 = arith.mulf %119, %118 : vector<8x8xf32>
    %121 = arith.addf %117, %120 : vector<8x8xf32>
    %122 = vector.broadcast %63 : vector<8x1xf32> to vector<8x8xf32>
    %123 = arith.addf %122, %121 : vector<8x8xf32>
    %cst_43 = arith.constant 1.500000e+01 : f32
    %124 = vector.broadcast %cst_43 : f32 to vector<8x8xf32>
    %125 = arith.divf %45, %124 : vector<8x8xf32>
    %126 = arith.mulf %125, %125 : vector<8x8xf32>
    %cst_44 = arith.constant 1.000000e+00 : f32
    %127 = vector.broadcast %cst_44 : f32 to vector<8x8xf32>
    %128 = arith.addf %127, %126 : vector<8x8xf32>
    %129 = math.sqrt %128 : vector<8x8xf32>
    %cst_45 = arith.constant 1.000000e+00 : f32
    %130 = vector.broadcast %cst_45 : f32 to vector<8x8xf32>
    %131 = arith.addf %130, %129 : vector<8x8xf32>
    %132 = math.log %131 : vector<8x8xf32>
    %133 = arith.subf %132, %129 : vector<8x8xf32>
    %cst_46 = arith.constant 1.500000e+01 : f32
    %134 = vector.broadcast %cst_46 : f32 to vector<8x8xf32>
    %135 = arith.mulf %134, %133 : vector<8x8xf32>
    %cst_47 = arith.constant 13.4876833 : f32
    %136 = vector.broadcast %cst_47 : f32 to vector<8x8xf32>
    %137 = arith.addf %136, %135 : vector<8x8xf32>
    %138 = math.log %129 : vector<8x8xf32>
    %cst_48 = arith.constant 5.000000e-01 : f32
    %139 = vector.broadcast %cst_48 : f32 to vector<8x8xf32>
    %140 = arith.mulf %139, %138 : vector<8x8xf32>
    %141 = arith.addf %137, %140 : vector<8x8xf32>
    %142 = arith.subf %123, %141 : vector<8x8xf32>
    %143 = vector.broadcast %0 : f32 to vector<8x8xf32>
    %144 = arith.mulf %142, %143 : vector<8x8xf32>
    %cst_49 = arith.constant dense<0xFF800000> : vector<8xf32>
    %145 = vector.multi_reduction <maximumf>, %144, %cst_49 [1] : vector<8x8xf32> to vector<8xf32>
    %146 = vector.shape_cast %145 : vector<8xf32> to vector<8x1xf32>
    %147 = arith.maximumf %103, %146 : vector<8x1xf32>
    %148 = arith.subf %103, %147 : vector<8x1xf32>
    %149 = math.exp %148 : vector<8x1xf32>
    %150 = vector.broadcast %147 : vector<8x1xf32> to vector<8x8xf32>
    %151 = arith.subf %144, %150 : vector<8x8xf32>
    %152 = math.exp %151 : vector<8x8xf32>
    %cst_50 = arith.constant dense<0.000000e+00> : vector<8xf32>
    %153 = vector.multi_reduction <add>, %152, %cst_50 [1] : vector<8x8xf32> to vector<8xf32>
    %154 = vector.shape_cast %153 : vector<8xf32> to vector<8x1xf32>
    %155 = arith.addf %149, %154 : vector<8x1xf32>
    %156 = math.log %155 : vector<8x1xf32>
    %157 = arith.addf %147, %156 : vector<8x1xf32>
    %158 = arith.subf %103, %157 : vector<8x1xf32>
    %c0_51 = arith.constant 0 : index
    %c0_52 = arith.constant 0 : index
    %159 = vector.load %arg8[%c0_51, %c0_52] : memref<8x1xf32, #tpu.memory_space<vmem>>, vector<8x1xf32>
    tpu.vector_store %arg8[%c0_51, %c0_52], %158 {strides = array<i32>} : memref<8x1xf32, #tpu.memory_space<vmem>>, vector<8x1xf32>,
    return
  }
  func.func @transform_0(%arg0: i32) -> i32 {
    %c0_i32 = arith.constant 0 : i32
    %c0_i32_0 = arith.constant 0 : i32
    return %c0_i32 : i32
  }
  func.func @transform_1(%arg0: i32) -> (i32, i32) {
    %c0_i32 = arith.constant 0 : i32
    %c0_i32_0 = arith.constant 0 : i32
    return %arg0, %c0_i32 : i32, i32
  }
  func.func @transform_2(%arg0: i32) -> (i32, i32) {
    %c0_i32 = arith.constant 0 : i32
    %c0_i32_0 = arith.constant 0 : i32
    return %arg0, %c0_i32 : i32, i32
  }
  func.func @transform_3(%arg0: i32) -> (i32, i32) {
    %c0_i32 = arith.constant 0 : i32
    %c0_i32_0 = arith.constant 0 : i32
    return %arg0, %c0_i32 : i32, i32
  }
  func.func @transform_4(%arg0: i32) -> (i32, i32) {
    %c0_i32 = arith.constant 0 : i32
    %c0_i32_0 = arith.constant 0 : i32
    return %arg0, %c0_i32 : i32, i32
  }
  func.func @transform_5(%arg0: i32) -> (i32, i32, i32) {
    %c0_i32 = arith.constant 0 : i32
    %c0_i32_0 = arith.constant 0 : i32
    %c0_i32_1 = arith.constant 0 : i32
    return %arg0, %c0_i32, %c0_i32_0 : i32, i32, i32
  }
  func.func @transform_6(%arg0: i32) -> (i32, i32) {
    %c0_i32 = arith.constant 0 : i32
    %c0_i32_0 = arith.constant 0 : i32
    return %arg0, %c0_i32 : i32, i32
  }
  func.func @transform_7(%arg0: i32) -> (i32, i32) {
    %c0_i32 = arith.constant 0 : i32
    %c0_i32_0 = arith.constant 0 : i32
    return %arg0, %c0_i32 : i32, i32
  }
}

</mosaic_0001>

<llo_original>
// kernel: elk_forward.1
$region0: #{elk_forward.1}
  #allocation0 [shape = 'u32[]', space=smem, size = 0x4, offset = 0x4, fixed_abs, tag = 'smem constant byte address 0x4 - core index']
  #allocation1 [shape = 'u32[144,128]{1,0:T(1,128)}', space=vmem, size = 0x12000, scoped, tag = 'internal scratch']
  #allocation2 [shape = 'f32[1]{0:T(128)S(6)}', space=smem, size = 0x200, scoped, tag = 'scoped memory for elk_forward.1']
  %s0 = inlined_call_operand.<no memory space> [shape: f32[1], index: 0, kind: input, shape index: {}]
  %s1 = inlined_call_operand.vmem [shape: f32[8,32], index: 1, kind: input, shape index: {}]
  %s2 = inlined_call_operand.vmem [shape: f32[8,1], index: 2, kind: input, shape index: {}]
  %s3 = inlined_call_operand.vmem [shape: f32[8,32], index: 3, kind: input, shape index: {}]
  %s4 = inlined_call_operand.vmem [shape: f32[8,1], index: 4, kind: input, shape index: {}]
  %s5 = inlined_call_operand.hbm [shape: f32[8,8,32], index: 5, kind: input, shape index: {}]
  %s6 = inlined_call_operand.vmem [shape: f32[8,8], index: 6, kind: input, shape index: {}]
  %s7 = inlined_call_operand.vmem [shape: f32[8,1], index: 7, kind: output, shape index: {}]
  %s8 = sld [smem:[#allocation0]]
  $region42: #{elk_forward.1} parent=0
    _
  %s10 = ssub.s32 1, %s8
  %s11 = scalar_select 0, %s10, %s8
  %12 = sst [smem:[#allocation2]] %s0
  $region1: #{elk_forward.1} parent=0
    #allocation3 [shape = 'u8[32768]{0}', space=vmem, size = 0x8000, scoped, tag = 'input window, operand 5, single buffered']
    #allocation4 [shape = 's32[1]{0}', space=sflag, size = 0x4, scoped, tag = 'scoped memory for elk_forward.1']
    %13 = vsyncpa [#allocation4], 0
    // Predicated region
    $region2: #{elk_forward.1} parent=1 // pred_check
      _
    $region3: #{elk_forward.1} parent=1 // pred_check_branch
      %15 = sbr.rel (0) target = $region5
    $region4: #{elk_forward.1} parent=1 // pred_region
      _
    $region5: #{elk_forward.1} parent=1 // pred_fallthru
      _
    // Predicated region
    $region6: #{elk_forward.1} parent=1 // pred_check
      _
    $region7: #{elk_forward.1} parent=1 // pred_check_branch
      %17 = sbr.rel (0) target = $region9
    $region8: #{elk_forward.1} parent=1 // pred_region
      _
    $region9: #{elk_forward.1} parent=1 // pred_fallthru
      _
    // Predicated region
    $region10: #{elk_forward.1} parent=1 // pred_check
      _
    $region11: #{elk_forward.1} parent=1 // pred_check_branch
      %19 = sbr.rel (0) target = $region13
    $region12: #{elk_forward.1} parent=1 // pred_region
      _
    $region13: #{elk_forward.1} parent=1 // pred_fallthru
      _
    // Predicated region
    $region14: #{elk_forward.1} parent=1 // pred_check
      _
    $region15: #{elk_forward.1} parent=1 // pred_check_branch
      %21 = sbr.rel (0) target = $region17
    $region16: #{elk_forward.1} parent=1 // pred_region
      _
    $region17: #{elk_forward.1} parent=1 // pred_fallthru
      _
    // Predicated region
    $region18: #{elk_forward.1} parent=1 // pred_check
      _
    $region19: #{elk_forward.1} parent=1 // pred_check_branch
      %23 = sbr.rel (0) target = $region21
    $region20: #{elk_forward.1} parent=1 // pred_region
      _
    $region21: #{elk_forward.1} parent=1 // pred_fallthru
      _
    // Predicated region
    $region22: #{elk_forward.1} parent=1 // pred_check
      _
    $region23: #{elk_forward.1} parent=1 // pred_check_branch
      %25 = sbr.rel (0) target = $region25
    $region24: #{elk_forward.1} parent=1 // pred_region
      %s27 = ssub.s32 1024, 1024
      %28 = vsyncadd [#allocation4], %s27
      %s29 = sshll.u32 [#allocation3], 4
      %s30 = int_to_ptr.vmem [resolvable:$true] %s29
      %35 = dma.hbm_to_vmem [thread:$0]  %s5, 1024, %s30, [#allocation4], 128, 128, 8
    $region25: #{elk_forward.1} parent=1 // pred_fallthru
      _
    // Predicated region
    $region26: #{elk_forward.1} parent=1 // pred_check
      _
    $region27: #{elk_forward.1} parent=1 // pred_check_branch
      %37 = sbr.rel (0) target = $region29
    $region28: #{elk_forward.1} parent=1 // pred_region
      _
    $region29: #{elk_forward.1} parent=1 // pred_fallthru
      _
    // Predicated region
    $region30: #{elk_forward.1} parent=1 // pred_check
      _
    $region31: #{elk_forward.1} parent=1 // pred_check_branch
      %39 = sbr.rel (0) target = $region33
    $region32: #{elk_forward.1} parent=1 // pred_region
      %40 = dma.done [#allocation4], 1024
    $region33: #{elk_forward.1} parent=1 // pred_fallthru
      _
    %s41 = sld [smem:[#allocation2]]
    %v42 = vld [vmem:[%s1] sm:$0xff]
    %v43 = vld [vmem:[%s3] sm:$0xff]
    %v44 = vld [vmem:[#allocation3] sm:$0xff]
    %v45 = vld [vmem:[#allocation3 + $0x8] sm:$0xff]
    %v46 = vld [vmem:[#allocation3 + $0x10] sm:$0xff]
    %v47 = vld [vmem:[#allocation3 + $0x18] sm:$0xff]
    %v48 = vld [vmem:[#allocation3 + $0x20] sm:$0xff]
    %v49 = vld [vmem:[#allocation3 + $0x28] sm:$0xff]
    %v50 = vld [vmem:[#allocation3 + $0x30] sm:$0xff]
    %v51 = vld [vmem:[#allocation3 + $0x38] sm:$0xff]
    %v52 = vld [vmem:[%s2] sm:$0xff]
    %v53 = vld [vmem:[%s4] sm:$0xff]
    %v54 = vld [vmem:[%s6] sm:$0xff]
    %v55 = vmul.f32 %v42, %v43
    %vm56 = vcmask 261120
    %v57 = vsel %vm56, %v55, 0.0
    %58 = vadd.xlane.f32.xlu0 %v57
    %v59 = vpop.xlane.xlu0 %58
    %v60 = vmul.f32 %v42, %v42
    %v61 = vsel %vm56, %v60, 0.0
    %62 = vadd.xlane.f32.xlu0 %v61
    %v63 = vpop.xlane.xlu0 %62
    %v64 = vmul.f32 %v43, %v43
    %v65 = vsel %vm56, %v64, 0.0
    %66 = vadd.xlane.f32.xlu0 %v65
    %v67 = vpop.xlane.xlu0 %66
    %v69 = vcombine.high %v42, %v42
    %v71 = vunpack.c.l.s4 1966171168
    %v72 = vunpack.c.0.s8 %v71
    %v73 = vlaneseq
    %v74 = vshrl.u32 %v73, 7
    %v75 = vsub.s32 %v72, %v74
    %v76 = vrot.slane %v42, %v75
    %v78 = vunpack.c.l.s4 1966171168
    %v79 = vunpack.c.0.s8 %v78
    %v80 = vlaneseq
    %v81 = vshrl.u32 %v80, 7
    %v82 = vsub.s32 %v79, %v81
    %v83 = vrot.slane %v69, %v82
    %v84 = vcombine.high %v76, %v76
    %v85 = vcombine.high %v83, %v83
    %v87 = vunpack.c.l.s4 1966171168
    %v88 = vunpack.c.0.s8 %v87
    %v89 = vlaneseq
    %v90 = vshrl.u32 %v89, 7
    %v91 = vsub.s32 %v88, %v90
    %v92 = vrot.slane %v76, %v91
    %v94 = vunpack.c.l.s4 1966171168
    %v95 = vunpack.c.0.s8 %v94
    %v96 = vlaneseq
    %v97 = vshrl.u32 %v96, 7
    %v98 = vsub.s32 %v95, %v97
    %v99 = vrot.slane %v83, %v98
    %v101 = vunpack.c.l.s4 1966171168
    %v102 = vunpack.c.0.s8 %v101
    %v103 = vlaneseq
    %v104 = vshrl.u32 %v103, 7
    %v105 = vsub.s32 %v102, %v104
    %v106 = vrot.slane %v84, %v105
    %v108 = vunpack.c.l.s4 1966171168
    %v109 = vunpack.c.0.s8 %v108
    %v110 = vlaneseq
    %v111 = vshrl.u32 %v110, 7
    %v112 = vsub.s32 %v109, %v111
    %v113 = vrot.slane %v85, %v112
    %v114 = vcombine.high %v92, %v92
    %v115 = vcombine.high %v99, %v99
    %v116 = vcombine.high %v106, %v106
    %v117 = vcombine.high %v113, %v113
    %v118 = vlaneseq
    %v119 = vshrl.u32 %v118, 7
    %v120 = vsub.s32 0, %v119
    %v121 = vrot.slane %v92, %v120
    %v122 = vlaneseq
    %v123 = vshrl.u32 %v122, 7
    %v124 = vsub.s32 0, %v123
    %v125 = vrot.slane %v106, %v124
    %v126 = vlaneseq
    %v127 = vshrl.u32 %v126, 7
    %v128 = vsub.s32 0, %v127
    %v129 = vrot.slane %v114, %v128
    %v130 = vlaneseq
    %v131 = vshrl.u32 %v130, 7
    %v132 = vsub.s32 0, %v131
    %v133 = vrot.slane %v116, %v132
    %v134 = vlaneseq
    %v135 = vshrl.u32 %v134, 7
    %v136 = vsub.s32 0, %v135
    %v137 = vrot.slane %v99, %v136
    %v138 = vlaneseq
    %v139 = vshrl.u32 %v138, 7
    %v140 = vsub.s32 0, %v139
    %v141 = vrot.slane %v113, %v140
    %v142 = vlaneseq
    %v143 = vshrl.u32 %v142, 7
    %v144 = vsub.s32 0, %v143
    %v145 = vrot.slane %v115, %v144
    %v146 = vlaneseq
    %v147 = vshrl.u32 %v146, 7
    %v148 = vsub.s32 0, %v147
    %v149 = vrot.slane %v117, %v148
    %v158 = vmul.f32 %v121, %v44
    %v159 = vmul.f32 %v125, %v45
    %v160 = vmul.f32 %v129, %v46
    %v161 = vmul.f32 %v133, %v47
    %v162 = vmul.f32 %v137, %v48
    %v163 = vmul.f32 %v141, %v49
    %v164 = vmul.f32 %v145, %v50
    %v165 = vmul.f32 %v149, %v51
    %v166 = vsel %vm56, %v158, 0.0
    %167 = vadd.xlane.f32.xlu0 %v166
    %v168 = vpop.xlane.xlu0 %167
    %v169 = vsel %vm56, %v159, 0.0
    %170 = vadd.xlane.f32.xlu0 %v169
    %v171 = vpop.xlane.xlu0 %170
    %v172 = vsel %vm56, %v160, 0.0
    %173 = vadd.xlane.f32.xlu0 %v172
    %v174 = vpop.xlane.xlu0 %173
    %v175 = vsel %vm56, %v161, 0.0
    %176 = vadd.xlane.f32.xlu0 %v175
    %v177 = vpop.xlane.xlu0 %176
    %v178 = vsel %vm56, %v162, 0.0
    %179 = vadd.xlane.f32.xlu0 %v178
    %v180 = vpop.xlane.xlu0 %179
    %v181 = vsel %vm56, %v163, 0.0
    %182 = vadd.xlane.f32.xlu0 %v181
    %v183 = vpop.xlane.xlu0 %182
    %v184 = vsel %vm56, %v164, 0.0
    %185 = vadd.xlane.f32.xlu0 %v184
    %v186 = vpop.xlane.xlu0 %185
    %v187 = vsel %vm56, %v165, 0.0
    %188 = vadd.xlane.f32.xlu0 %v187
    %v189 = vpop.xlane.xlu0 %188
    %v190 = vmul.f32 %v44, %v44
    %v191 = vmul.f32 %v45, %v45
    %v192 = vmul.f32 %v46, %v46
    %v193 = vmul.f32 %v47, %v47
    %v194 = vmul.f32 %v48, %v48
    %v195 = vmul.f32 %v49, %v49
    %v196 = vmul.f32 %v50, %v50
    %v197 = vmul.f32 %v51, %v51
    %v198 = vsel %vm56, %v190, 0.0
    %199 = vadd.xlane.f32.xlu0 %v198
    %v200 = vpop.xlane.xlu0 %199
    %v201 = vsel %vm56, %v191, 0.0
    %202 = vadd.xlane.f32.xlu0 %v201
    %v203 = vpop.xlane.xlu0 %202
    %v204 = vsel %vm56, %v192, 0.0
    %205 = vadd.xlane.f32.xlu0 %v204
    %v206 = vpop.xlane.xlu0 %205
    %v207 = vsel %vm56, %v193, 0.0
    %208 = vadd.xlane.f32.xlu0 %v207
    %v209 = vpop.xlane.xlu0 %208
    %v210 = vsel %vm56, %v194, 0.0
    %211 = vadd.xlane.f32.xlu0 %v210
    %v212 = vpop.xlane.xlu0 %211
    %v213 = vsel %vm56, %v195, 0.0
    %214 = vadd.xlane.f32.xlu0 %v213
    %v215 = vpop.xlane.xlu0 %214
    %v216 = vsel %vm56, %v196, 0.0
    %217 = vadd.xlane.f32.xlu0 %v216
    %v218 = vpop.xlane.xlu0 %217
    %v219 = vsel %vm56, %v197, 0.0
    %220 = vadd.xlane.f32.xlu0 %v219
    %v221 = vpop.xlane.xlu0 %220
    %v222 = vmul.f32 %v52, %v52
    %v223 = vmul.f32 %v222, %v63
    %v224 = vmul.f32 %v53, %v53
    %v225 = vmul.f32 %v224, %v67
    %v226 = vadd.f32 %v223, %v225
    %v227 = vmul.f32 %v52, %v53
    %v228 = vmul.f32 %v227, 2.0
    %v229 = vmul.f32 %v228, %v59
    %v230 = vadd.f32 %v226, %v229
    %v231 = vrsqrt.pop %v230
    %v232 = vmul.f32 %v230, %v231
    %vm233 = vcmp.eq.f32.partialorder %v230, inf
    %v234 = vsel %vm233, %v230, %v232
    %vm235 = vcmp.eq.f32.partialorder %v230, 0.0
    %v236 = vand.u32 %v230, 2147483648
    %v237 = vsel %vm235, %v236, %v234
    %v238 = vmul.f32 %v54, %v54
    %v247 = vlaneseq
    %v248 = vand.u32 %v247, 127
    %v249 = vlaneseq
    %v250 = vshrl.u32 %v249, 7
    %v251 = vsub.s32 %v248, %v250
    %v252 = vrot.slane %v200, %v251
    %v253 = vlaneseq
    %v254 = vshrl.u32 %v253, 7
    %v255 = vsub.s32 %v248, %v254
    %v256 = vrot.slane %v203, %v255
    %v257 = vlaneseq
    %v258 = vshrl.u32 %v257, 7
    %v259 = vsub.s32 %v248, %v258
    %v260 = vrot.slane %v206, %v259
    %v261 = vlaneseq
    %v262 = vshrl.u32 %v261, 7
    %v263 = vsub.s32 %v248, %v262
    %v264 = vrot.slane %v209, %v263
    %v265 = vlaneseq
    %v266 = vshrl.u32 %v265, 7
    %v267 = vsub.s32 %v248, %v266
    %v268 = vrot.slane %v212, %v267
    %v269 = vlaneseq
    %v270 = vshrl.u32 %v269, 7
    %v271 = vsub.s32 %v248, %v270
    %v272 = vrot.slane %v215, %v271
    %v273 = vlaneseq
    %v274 = vshrl.u32 %v273, 7
    %v275 = vsub.s32 %v248, %v274
    %v276 = vrot.slane %v218, %v275
    %v277 = vlaneseq
    %v278 = vshrl.u32 %v277, 7
    %v279 = vsub.s32 %v248, %v278
    %v280 = vrot.slane %v221, %v279
    %vm281 = vcmask 1041409
    %v282 = vsel %vm281, %v256, %v252
    %vm283 = vcmask 1042434
    %v284 = vsel %vm283, %v260, %v282
    %vm285 = vcmask 1043459
    %v286 = vsel %vm285, %v264, %v284
    %vm287 = vcmask 1044484
    %v288 = vsel %vm287, %v268, %v286
    %vm289 = vcmask 1045509
    %v290 = vsel %vm289, %v272, %v288
    %vm291 = vcmask 1046534
    %v292 = vsel %vm291, %v276, %v290
    %vm293 = vcmask 1047559
    %v294 = vsel %vm293, %v280, %v292
    %v296 = vmul.f32 %v238, %v294
    %298 = vset.pattern.permute.xlu0 0
    %299 = vperm.xlu0 %298, %v223
    %v300 = vpop.permute.xlu0 %299
    %v302 = vadd.f32 %v300, %v296
    %304 = vset.pattern.permute.xlu0 0
    %305 = vperm.xlu0 %304, %v52
    %v306 = vpop.permute.xlu0 %305
    %v308 = vmul.f32 %v306, %v54
    %v309 = vmul.f32 %v308, 2.0
    %v318 = vlaneseq
    %v319 = vshrl.u32 %v318, 7
    %v320 = vsub.s32 %v248, %v319
    %v321 = vrot.slane %v168, %v320
    %v322 = vlaneseq
    %v323 = vshrl.u32 %v322, 7
    %v324 = vsub.s32 %v248, %v323
    %v325 = vrot.slane %v171, %v324
    %v326 = vlaneseq
    %v327 = vshrl.u32 %v326, 7
    %v328 = vsub.s32 %v248, %v327
    %v329 = vrot.slane %v174, %v328
    %v330 = vlaneseq
    %v331 = vshrl.u32 %v330, 7
    %v332 = vsub.s32 %v248, %v331
    %v333 = vrot.slane %v177, %v332
    %v334 = vlaneseq
    %v335 = vshrl.u32 %v334, 7
    %v336 = vsub.s32 %v248, %v335
    %v337 = vrot.slane %v180, %v336
    %v338 = vlaneseq
    %v339 = vshrl.u32 %v338, 7
    %v340 = vsub.s32 %v248, %v339
    %v341 = vrot.slane %v183, %v340
    %v342 = vlaneseq
    %v343 = vshrl.u32 %v342, 7
    %v344 = vsub.s32 %v248, %v343
    %v345 = vrot.slane %v186, %v344
    %v346 = vlaneseq
    %v347 = vshrl.u32 %v346, 7
    %v348 = vsub.s32 %v248, %v347
    %v349 = vrot.slane %v189, %v348
    %v350 = vsel %vm281, %v325, %v321
    %v351 = vsel %vm283, %v329, %v350
    %v352 = vsel %vm285, %v333, %v351
    %v353 = vsel %vm287, %v337, %v352
    %v354 = vsel %vm289, %v341, %v353
    %v355 = vsel %vm291, %v345, %v354
    %v356 = vsel %vm293, %v349, %v355
    %v358 = vmul.f32 %v309, %v356
    %v359 = vadd.f32 %v302, %v358
    %v360 = vrsqrt.pop %v359
    %v361 = vmul.f32 %v359, %v360
    %vm362 = vcmp.eq.f32.partialorder %v359, inf
    %v363 = vsel %vm362, %v359, %v361
    %vm364 = vcmp.eq.f32.partialorder %v359, 0.0
    %v365 = vand.u32 %v359, 2147483648
    %v366 = vsel %vm364, %v365, %v363
    %v367 = vrcp.pop 15.0
    %v368 = vmul.f32 %v52, %v367
    %v369 = vmul.f32 %v368, %v368
    %v370 = vadd.f32 %v369, 1.0
    %v371 = vrsqrt.pop %v370
    %v372 = vmul.f32 %v370, %v371
    %vm373 = vcmp.eq.f32.partialorder %v370, inf
    %v374 = vsel %vm373, %v370, %v372
    %vm375 = vcmp.eq.f32.partialorder %v370, 0.0
    %v376 = vand.u32 %v370, 2147483648
    %v377 = vsel %vm375, %v376, %v374
    %v378 = vadd.f32 %v377, 1.0
    %v379 = vlog2.pop %v378
    %v380 = vmul.f32 %v379, 0.6931472
    %v381 = vsub.f32 %v380, %v377
    %v382 = vmul.f32 %v381, 15.0
    %v383 = vadd.f32 %v382, 13.487683
    %v384 = vlog2.pop %v377
    %v385 = vmul.f32 %v384, 0.6931472
    %v386 = vmul.f32 %v385, 0.5
    %v387 = vadd.f32 %v383, %v386
    %v388 = vmul.f32 %v53, %v367
    %v389 = vmul.f32 %v388, %v388
    %v390 = vadd.f32 %v389, 1.0
    %v391 = vrsqrt.pop %v390
    %v392 = vmul.f32 %v390, %v391
    %vm393 = vcmp.eq.f32.partialorder %v390, inf
    %v394 = vsel %vm393, %v390, %v392
    %vm395 = vcmp.eq.f32.partialorder %v390, 0.0
    %v396 = vand.u32 %v390, 2147483648
    %v397 = vsel %vm395, %v396, %v394
    %v398 = vadd.f32 %v397, 1.0
    %v399 = vlog2.pop %v398
    %v400 = vmul.f32 %v399, 0.6931472
    %v401 = vsub.f32 %v400, %v397
    %v402 = vmul.f32 %v401, 15.0
    %v403 = vadd.f32 %v402, 13.487683
    %v404 = vlog2.pop %v397
    %v405 = vmul.f32 %v404, 0.6931472
    %v406 = vmul.f32 %v405, 0.5
    %v407 = vadd.f32 %v403, %v406
    %v408 = vadd.f32 %v387, %v407
    %v409 = vmul.f32 %v237, %v367
    %v410 = vmul.f32 %v409, %v409
    %v411 = vadd.f32 %v410, 1.0
    %v412 = vrsqrt.pop %v411
    %v413 = vmul.f32 %v411, %v412
    %vm414 = vcmp.eq.f32.partialorder %v411, inf
    %v415 = vsel %vm414, %v411, %v413
    %vm416 = vcmp.eq.f32.partialorder %v411, 0.0
    %v417 = vand.u32 %v411, 2147483648
    %v418 = vsel %vm416, %v417, %v415
    %v419 = vadd.f32 %v418, 1.0
    %v420 = vlog2.pop %v419
    %v421 = vmul.f32 %v420, 0.6931472
    %v422 = vsub.f32 %v421, %v418
    %v423 = vmul.f32 %v422, 15.0
    %v424 = vadd.f32 %v423, 13.487683
    %v425 = vlog2.pop %v418
    %v426 = vmul.f32 %v425, 0.6931472
    %v427 = vmul.f32 %v426, 0.5
    %v428 = vadd.f32 %v424, %v427
    %v429 = vsub.f32 %v408, %v428
    %v430 = vstv %s41
    %v431 = vmul.f32 %v429, %v430
    %v432 = vmul.f32 %v54, %v367
    %v433 = vmul.f32 %v432, %v432
    %v434 = vadd.f32 %v433, 1.0
    %v435 = vrsqrt.pop %v434
    %v436 = vmul.f32 %v434, %v435
    %vm437 = vcmp.eq.f32.partialorder %v434, inf
    %v438 = vsel %vm437, %v434, %v436
    %vm439 = vcmp.eq.f32.partialorder %v434, 0.0
    %v440 = vand.u32 %v434, 2147483648
    %v441 = vsel %vm439, %v440, %v438
    %v442 = vadd.f32 %v441, 1.0
    %v443 = vlog2.pop %v442
    %v444 = vmul.f32 %v443, 0.6931472
    %v445 = vsub.f32 %v444, %v441
    %v446 = vmul.f32 %v445, 15.0
    %v447 = vadd.f32 %v446, 13.487683
    %v448 = vlog2.pop %v441
    %v449 = vmul.f32 %v448, 0.6931472
    %v450 = vmul.f32 %v449, 0.5
    %v451 = vadd.f32 %v447, %v450
    %453 = vset.pattern.permute.xlu0 0
    %454 = vperm.xlu0 %453, %v387
    %v455 = vpop.permute.xlu0 %454
    %v457 = vadd.f32 %v455, %v451
    %v458 = vmul.f32 %v366, %v367
    %v459 = vmul.f32 %v458, %v458
    %v460 = vadd.f32 %v459, 1.0
    %v461 = vrsqrt.pop %v460
    %v462 = vmul.f32 %v460, %v461
    %vm463 = vcmp.eq.f32.partialorder %v460, inf
    %v464 = vsel %vm463, %v460, %v462
    %vm465 = vcmp.eq.f32.partialorder %v460, 0.0
    %v466 = vand.u32 %v460, 2147483648
    %v467 = vsel %vm465, %v466, %v464
    %v468 = vadd.f32 %v467, 1.0
    %v469 = vlog2.pop %v468
    %v470 = vmul.f32 %v469, 0.6931472
    %v471 = vsub.f32 %v470, %v467
    %v472 = vmul.f32 %v471, 15.0
    %v473 = vadd.f32 %v472, 13.487683
    %v474 = vlog2.pop %v467
    %v475 = vmul.f32 %v474, 0.6931472
    %v476 = vmul.f32 %v475, 0.5
    %v477 = vadd.f32 %v473, %v476
    %v478 = vsub.f32 %v457, %v477
    %v479 = vmul.f32 %v478, %v430
    %vm480 = vcmask 64512
    %v481 = vsel %vm480, %v479, -inf
    %482 = vmax.xlane.f32.xlu0 %v481
    %v483 = vpop.xlane.xlu0 %482
    %v484 = vmax.f32 %v431, %v483
    %v485 = vsub.f32 %v431, %v484
    %v486 = vmul.f32 %v485, 1.442695
    %v487 = vpow.pop %v486
    %489 = vset.pattern.permute.xlu0 0
    %490 = vperm.xlu0 %489, %v484
    %v491 = vpop.permute.xlu0 %490
    %v493 = vsub.f32 %v479, %v491
    %v494 = vmul.f32 %v493, 1.442695
    %v495 = vpow.pop %v494
    %v496 = vsel %vm480, %v495, 0.0
    %497 = vadd.xlane.f32.xlu0 %v496
    %v498 = vpop.xlane.xlu0 %497
    %v499 = vadd.f32 %v487, %v498
    %v500 = vlog2.pop %v499
    %v501 = vmul.f32 %v500, 0.6931472
    %v502 = vadd.f32 %v484, %v501
    %v503 = vsub.f32 %v431, %v502
    %vm504 = vcmask 7168
    %505 = vst.msk [vmem:[%s7] sm:$0xff] %vm504, %v503
    // Predicated region
    $region34: #{elk_forward.1} parent=1 // pred_check
      _
    $region35: #{elk_forward.1} parent=1 // pred_check_branch
      %507 = sbr.rel (0) target = $region37
    $region36: #{elk_forward.1} parent=1 // pred_region
      _
    $region37: #{elk_forward.1} parent=1 // pred_fallthru
      _
    // Predicated region
    $region38: #{elk_forward.1} parent=1 // pred_check
      _
    $region39: #{elk_forward.1} parent=1 // pred_check_branch
      %509 = sbr.rel (0) target = $region41
    $region40: #{elk_forward.1} parent=1 // pred_region
      _
    $region41: #{elk_forward.1} parent=1 // pred_fallthru
      _
    %510 = vsyncpa [#allocation4], 1

</llo_original>
